<compile_context>
chip_gen: v6e
topology: v6e:2x2x1
jax: 0.10.0
libtpu: 0.0.40
codegen_flags: <defaults>
</compile_context>

<pallas_src>
import functools

import jax
import jax.numpy as jnp
from jax.experimental import pallas as pl
from jax.experimental.pallas import tpu as pltpu


def _diag_gaussian_mean_kernel(x_ref, wt_ref, b_ref, mean_ref):
    """Gridless kernel; all operands resident in VMEM (full-array blocks).

    x_ref   : (B, K)  f32  activations (unpadded)
    wt_ref  : (K, N)  f32  pre-transposed weight (unpadded)
    b_ref   : (1, N)  f32  bias row
    mean_ref: (B, N)  f32  action_mean output (unpadded)
    """
    # MXU matmul with f32 accumulation, then bias-row broadcast add (VPU).
    mean_ref[...] = (
        jnp.dot(x_ref[...], wt_ref[...], preferred_element_type=jnp.float32)
        + b_ref[...]
    )


def prepare_params(weight, bias, logstd):
    """One-time (init-time) parameter prep: transpose + pre-exp.

    weight: (num_outputs, num_inputs); bias, logstd: (num_outputs,)
    Returns:
      wt        : (num_inputs, num_outputs) f32  -- W^T
      bias_row  : (1, num_outputs)          f32
      scale_row : (1, num_outputs)          f32  -- exp(logstd), precomputed
    """
    wt = weight.T.astype(jnp.float32)
    bias_row = bias.astype(jnp.float32)[None, :]
    scale_row = jnp.exp(logstd.astype(jnp.float32))[None, :]
    return wt, bias_row, scale_row


@jax.jit
def diag_gaussian_forward(x, wt, bias_row, scale_row):
    """x: (B, num_inputs) f32. Returns (mean, scale), each (B, num_outputs) f32."""
    B = x.shape[0]
    n_out = wt.shape[1]

    mean = pl.pallas_call(
        _diag_gaussian_mean_kernel,
        out_shape=jax.ShapeDtypeStruct((B, n_out), jnp.float32),
        in_specs=[
            pl.BlockSpec(memory_space=pltpu.MemorySpace.VMEM),
            pl.BlockSpec(memory_space=pltpu.MemorySpace.VMEM),
            pl.BlockSpec(memory_space=pltpu.MemorySpace.VMEM),
        ],
        out_specs=pl.BlockSpec(memory_space=pltpu.MemorySpace.VMEM),
    )(x.astype(jnp.float32), wt, bias_row)

    # scale = exp(logstd) broadcast to mean's shape; constant w.r.t. x, so it is
    # produced outside the kernel (no stores, no extra output stream).
    scale = jnp.broadcast_to(scale_row, mean.shape)
    return mean, scale


def orthogonal_init(key, rows, cols, gain=1.0):
    """Deterministic orthogonal init matching nn.init.orthogonal_ semantics."""
    n, m = (rows, cols) if rows >= cols else (cols, rows)
    a = jax.random.normal(key, (n, m), dtype=jnp.float32)
    q, r = jnp.linalg.qr(a)
    d = jnp.sign(jnp.diag(r))          # sign correction (as torch does)
    q = q * d[None, :]
    if rows < cols:
        q = q.T
    return gain * q[:rows, :cols]


if __name__ == "__main__":
    # Module hyperparams (small, forward-consistent): Linear(num_inputs -> num_outputs)
    num_inputs = 32
    num_outputs = 8
    batch = 2

    key = jax.random.PRNGKey(0)
    kx, kw = jax.random.split(key)

    # Parameters (deterministic, matching __init__):
    #   fc_mean.weight: orthogonal, (num_outputs, num_inputs); fc_mean.bias: zeros
    #   logstd bias (AddBias param): zeros(num_outputs)
    weight = orthogonal_init(kw, num_outputs, num_inputs)
    bias = jnp.zeros((num_outputs,), jnp.float32)
    logstd = jnp.zeros((num_outputs,), jnp.float32)

    x = jax.random.normal(kx, (batch, num_inputs), dtype=jnp.float32)

    # One-time parameter prep (transpose / pre-exp), then forward.
    wt, bias_row, scale_row = prepare_params(weight, bias, logstd)
    mean, scale = diag_gaussian_forward(x, wt, bias_row, scale_row)
    jax.block_until_ready((mean, scale))

    # Reference check in plain JAX.
    ref_mean = x @ weight.T + bias[None, :]
    ref_scale = jnp.exp(jnp.broadcast_to(logstd[None, :], ref_mean.shape))
    assert mean.shape == (batch, num_outputs) and scale.shape == (batch, num_outputs)
    assert jnp.allclose(mean, ref_mean, atol=1e-5, rtol=1e-5)
    assert jnp.allclose(scale, ref_scale, atol=1e-6, rtol=1e-6)

    print("KERNEL_OK")
</pallas_src>

<mosaic_0001>
module attributes {stable_mosaic.version = 11 : i64} {
  func.func @_diag_gaussian_mean_kernel(%arg0: memref<2x32xf32, #tpu.memory_space<vmem>>, %arg1: memref<32x8xf32, #tpu.memory_space<vmem>>, %arg2: memref<1x8xf32, #tpu.memory_space<vmem>>, %arg3: memref<2x8xf32, #tpu.memory_space<vmem>>) attributes {dimension_semantics = [], scalar_prefetch = 0 : i64, scratch_operands = 0 : i64, tpu.core_type = #tpu.core_type<tc>} {
    %c0 = arith.constant 0 : index
    %c0_0 = arith.constant 0 : index
    %0 = vector.load %arg0[%c0, %c0_0] : memref<2x32xf32, #tpu.memory_space<vmem>>, vector<2x32xf32>
    %c0_1 = arith.constant 0 : index
    %c0_2 = arith.constant 0 : index
    %1 = vector.load %arg1[%c0_1, %c0_2] : memref<32x8xf32, #tpu.memory_space<vmem>>, vector<32x8xf32>
    %cst = arith.constant dense<0.000000e+00> : vector<2x8xf32>
    %2 = tpu.matmul %0, %1, %cst {dimension_numbers = #tpu.dot_dimension_numbers<[1], [0], [0], [1], [0, 0, 1, 1], [], []>} : vector<2x32xf32>, vector<32x8xf32>, vector<2x8xf32> -> vector<2x8xf32>
    %c0_3 = arith.constant 0 : index
    %c0_4 = arith.constant 0 : index
    %3 = vector.load %arg2[%c0_3, %c0_4] : memref<1x8xf32, #tpu.memory_space<vmem>>, vector<1x8xf32>
    %4 = vector.broadcast %3 : vector<1x8xf32> to vector<2x8xf32>
    %5 = arith.addf %2, %4 : vector<2x8xf32>
    %c0_5 = arith.constant 0 : index
    %c0_6 = arith.constant 0 : index
    %6 = vector.load %arg3[%c0_5, %c0_6] : memref<2x8xf32, #tpu.memory_space<vmem>>, vector<2x8xf32>
    tpu.vector_store %arg3[%c0_5, %c0_6], %5 {strides = array<i32>} : memref<2x8xf32, #tpu.memory_space<vmem>>, vector<2x8xf32>,
    return
  }
}

</mosaic_0001>

<llo_original>
// kernel: diag_gaussian_forward.1
$region0: #{diag_gaussian_forward.1}
  #allocation0 [shape = 'u32[]', space=smem, size = 0x4, offset = 0x4, fixed_abs, tag = 'smem constant byte address 0x4 - core index']
  #allocation1 [shape = 'u32[144,128]{1,0:T(1,128)}', space=vmem, size = 0x12000, scoped, tag = 'internal scratch']
  %s0 = inlined_call_operand.vmem [shape: f32[2,32], index: 0, kind: input, shape index: {}]
  %s1 = inlined_call_operand.vmem [shape: f32[32,8], index: 1, kind: input, shape index: {}]
  %s2 = inlined_call_operand.vmem [shape: f32[1,8], index: 2, kind: input, shape index: {}]
  %s3 = inlined_call_operand.hbm [shape: f32[2,8], index: 3, kind: output, shape index: {}]
  %s4 = sld [smem:[#allocation0]]
  $region22: #{diag_gaussian_forward.1} parent=0
    _
  %s6 = ssub.s32 1, %s4
  %s7 = scalar_select 0, %s6, %s4
  $region1: #{diag_gaussian_forward.1} parent=0
    #allocation2 [shape = 'u8[1024]{0}', space=vmem, size = 0x400, scoped, tag = 'output window, operand 0, single buffered']
    #allocation3 [shape = 's32[1]{0}', space=sflag, size = 0x4, scoped, tag = 'scoped memory for diag_gaussian_forward.1']
    %8 = vsyncpa [#allocation3], 0
    // Predicated region
    $region2: #{diag_gaussian_forward.1} parent=1 // pred_check
      _
    $region3: #{diag_gaussian_forward.1} parent=1 // pred_check_branch
      %10 = sbr.rel (0) target = $region5
    $region4: #{diag_gaussian_forward.1} parent=1 // pred_region
      _
    $region5: #{diag_gaussian_forward.1} parent=1 // pred_fallthru
      _
    // Predicated region
    $region6: #{diag_gaussian_forward.1} parent=1 // pred_check
      _
    $region7: #{diag_gaussian_forward.1} parent=1 // pred_check_branch
      %12 = sbr.rel (0) target = $region9
    $region8: #{diag_gaussian_forward.1} parent=1 // pred_region
      _
    $region9: #{diag_gaussian_forward.1} parent=1 // pred_fallthru
      _
    // Predicated region
    $region10: #{diag_gaussian_forward.1} parent=1 // pred_check
      _
    $region11: #{diag_gaussian_forward.1} parent=1 // pred_check_branch
      %14 = sbr.rel (0) target = $region13
    $region12: #{diag_gaussian_forward.1} parent=1 // pred_region
      _
    $region13: #{diag_gaussian_forward.1} parent=1 // pred_fallthru
      _
    %v15 = vld [vmem:[%s0] sm:$0x3]
    %v16 = vld [vmem:[%s1] sm:$0xff]
    %v17 = vld [vmem:[%s1 + $0x8] sm:$0xff]
    %v18 = vld [vmem:[%s1 + $0x10] sm:$0xff]
    %v19 = vld [vmem:[%s1 + $0x18] sm:$0xff]
    %v20 = vld [vmem:[%s2] sm:$0x1]
    %v22 = vlaneseq
    %v23 = vshrl.u32 %v22, 7
    %v24 = vsub.s32 0, %v23
    %v25 = vrot.slane %v20, %v24
    %vm27 = vcmask 261120
    %v29 = vsel %vm27, %v15, 0
    %31 = vmatprep.subr.mxu0 0.0
    %32 = vmatpush1.msra.mxu0 0.0
    %33 = vmatprep.subr.mxu0 0.0
    %34 = vmatpush1.msra.mxu0 0.0
    %35 = vmatprep.subr.mxu0 0.0
    %36 = vmatpush1.msra.mxu0 0.0
    %37 = vmatprep.subr.mxu0 0.0
    %38 = vmatpush1.msra.mxu0 0.0
    %39 = vmatprep.subr.mxu0 0.0
    %40 = vmatpush1.msra.mxu0 0.0
    %41 = vmatprep.subr.mxu0 0.0
    %42 = vmatpush1.msra.mxu0 0.0
    %43 = vmatprep.subr.mxu0 0.0
    %44 = vmatpush1.msra.mxu0 0.0
    %45 = vmatprep.subr.mxu0 0.0
    %46 = vmatpush1.msra.mxu0 0.0
    %47 = vmatprep.subr.mxu0 0.0
    %48 = vmatpush1.msra.mxu0 0.0
    %49 = vmatprep.subr.mxu0 0.0
    %50 = vmatpush1.msra.mxu0 0.0
    %51 = vmatprep.subr.mxu0 0.0
    %52 = vmatpush1.msra.mxu0 0.0
    %53 = vmatprep.subr.mxu0 0.0
    %54 = vmatpush1.msra.mxu0 0.0
    %55 = vmatprep.subr.mxu0 0.0
    %56 = vmatpush1.msra.mxu0 %v19
    %57 = vmatprep.subr.mxu0 0.0
    %58 = vmatpush1.msra.mxu0 %v18
    %59 = vmatprep.subr.mxu0 0.0
    %60 = vmatpush1.msra.mxu0 %v17
    %61 = vmatprep.subr.mxu0 0.0
    %62 = vmatpush1.msra.mxu0 %v16
    %63 = vmatprep.subr.mxu0 0.0
    %64 = vmatpush2.msra.mxu0 0.0
    %65 = vmatprep.subr.mxu0 0.0
    %66 = vmatpush2.msra.mxu0 0.0
    %67 = vmatprep.subr.mxu0 0.0
    %68 = vmatpush2.msra.mxu0 0.0
    %69 = vmatprep.subr.mxu0 0.0
    %70 = vmatpush2.msra.mxu0 0.0
    %71 = vmatprep.subr.mxu0 0.0
    %72 = vmatpush2.msra.mxu0 0.0
    %73 = vmatprep.subr.mxu0 0.0
    %74 = vmatpush2.msra.mxu0 0.0
    %75 = vmatprep.subr.mxu0 0.0
    %76 = vmatpush2.msra.mxu0 0.0
    %77 = vmatprep.subr.mxu0 0.0
    %78 = vmatpush2.msra.mxu0 0.0
    %79 = vmatprep.subr.mxu0 0.0
    %80 = vmatpush2.msra.mxu0 0.0
    %81 = vmatprep.subr.mxu0 0.0
    %82 = vmatpush2.msra.mxu0 0.0
    %83 = vmatprep.subr.mxu0 0.0
    %84 = vmatpush2.msra.mxu0 0.0
    %85 = vmatprep.subr.mxu0 0.0
    %86 = vmatpush2.msra.mxu0 0.0
    %87 = vmatprep.subr.mxu0 0.0
    %88 = vmatpush2.msra.mxu0 0.0
    %89 = vmatprep.subr.mxu0 0.0
    %90 = vmatpush2.msra.mxu0 0.0
    %91 = vmatprep.subr.mxu0 0.0
    %92 = vmatpush2.msra.mxu0 0.0
    %93 = vmatprep.subr.mxu0 0.0
    %94 = vmatpush2.msra.mxu0 0.0
    %95 = vmatprep.mubr.f32.mxu0 0.0
    %96 = vmatmul.mubr.f32.gmra.mxu0 %v29
    %v97 = vpop.f32.mrf.mxu0
    %v98 = vadd.f32 %v25, %v97
    %v99 = vpop.f32.mrf.mxu0
    %100 = vdwg.mxu0
    %vm101 = vcmask 58368
    %102 = vst.msk [vmem:[#allocation2] sm:$0x3] %vm101, %v98
    // Predicated region
    $region14: #{diag_gaussian_forward.1} parent=1 // pred_check
      _
    $region15: #{diag_gaussian_forward.1} parent=1 // pred_check_branch
      %104 = sbr.rel (0) target = $region17
    $region16: #{diag_gaussian_forward.1} parent=1 // pred_region
      %s106 = ssub.s32 32, 32
      %107 = vsyncadd [#allocation3], %s106
      %s109 = sshll.u32 [#allocation2], 4
      %s110 = int_to_ptr.vmem [resolvable:$true] %s109
      %112 = dma.vmem_to_hbm [thread:$0]  %s110, 32, %s3, [#allocation3]
    $region17: #{diag_gaussian_forward.1} parent=1 // pred_fallthru
      _
    // Predicated region
    $region18: #{diag_gaussian_forward.1} parent=1 // pred_check
      _
    $region19: #{diag_gaussian_forward.1} parent=1 // pred_check_branch
      %114 = sbr.rel (0) target = $region21
    $region20: #{diag_gaussian_forward.1} parent=1 // pred_region
      %115 = dma.done [#allocation3], 32
    $region21: #{diag_gaussian_forward.1} parent=1 // pred_fallthru
      _
    %116 = vsyncpa [#allocation3], 1

</llo_original>
